<compile_context>
chip_gen: v7x
topology: tpu7x:2x2x1
jax: 0.10.0
libtpu: 0.0.40
codegen_flags: <defaults>
</compile_context>

<pallas_src>
import functools
import math

import jax
import jax.numpy as jnp
from jax import lax
from jax.experimental import pallas as pl
from jax.experimental.pallas import tpu as pltpu


def _pick_vmem_limit():
    """Generation-aware scoped-VMEM limit (bytes)."""
    default = 32 * 1024 * 1024
    try:
        cap = int(pltpu.get_tpu_info().vmem_capacity_bytes)
    except Exception:  # not on TPU / API unavailable -> conservative default
        return default
    if cap >= 128 * 1024 * 1024:          # v5e / v6e / v5p: plenty of physical VMEM
        return 96 * 1024 * 1024
    return min(3 * cap // 4, 48 * 1024 * 1024)   # v7x (64 MiB) and smaller parts


_VMEM_LIMIT = _pick_vmem_limit()


def _row_tile(R, per_row_bytes, resident_bytes=0):
    """Largest row tile that fits the VMEM budget; prefer >= 2 grid steps."""
    budget = _VMEM_LIMIT - resident_bytes
    cap = max(budget // max(per_row_bytes, 1), 8)
    fallback = None
    for t in (1024, 512, 256, 128, 64, 32, 16, 8):
        if t > cap or R % t:
            continue
        if R // t >= 2:
            return t
        if fallback is None:
            fallback = t          # divides but only 1 step; keep looking for >=2
    return fallback if fallback is not None else R


def _q_tile(S):
    for t in (256, 128):
        if S % t == 0:
            return t
    return S


def _dense_params():
    return pltpu.CompilerParams(dimension_semantics=("parallel",),
                                vmem_limit_bytes=_VMEM_LIMIT)


def _ln_stats(x, eps):
    # Annotated-Transformer LayerNorm: mean, *unbiased* std (ddof=1), / (std + eps).
    d = x.shape[-1]
    mean = jnp.mean(x, axis=-1, keepdims=True)
    diff = x - mean
    var = jnp.sum(diff * diff, axis=-1, keepdims=True) * (1.0 / (d - 1))
    inv = pl.reciprocal(jnp.sqrt(var) + eps, approx=False)   # EUP slot, frees VALU
    return diff, inv


# --------------------------- fused LN1 + QKV projection --------------------------

def _ln_qkv_kernel(x_ref, g_ref, b_ref, w_ref, bias_ref, o_ref, *, eps):
    x = x_ref[...]                                            # (TR, D) f32
    diff, inv = _ln_stats(x, eps)
    xn = g_ref[...] * diff * inv + b_ref[...]                 # f32 LN
    acc = jnp.dot(xn.astype(jnp.bfloat16), w_ref[...],        # bf16 MXU, f32 acc
                  preferred_element_type=jnp.float32) + bias_ref[...]
    o_ref[...] = acc.astype(o_ref.dtype)                      # lane-dense (TR, 3D)


def ln_qkv(x2d, gamma, beta, w_qkv_t, b_qkv, eps=1e-6):
    R, D = x2d.shape
    D3 = w_qkv_t.shape[1]
    resident = 2 * 2 * D * D3                 # double-buffered bf16 QKV weight
    per_row = 12 * D + 8 * D3                 # x f32 2-buf + temps + bf16 out 2-buf
    TR = _row_tile(R, per_row, resident)
    return pl.pallas_call(
        functools.partial(_ln_qkv_kernel, eps=eps),
        grid=(R // TR,),
        in_specs=[
            pl.BlockSpec((TR, D), lambda i: (i, 0)),
            pl.BlockSpec((1, D), lambda i: (0, 0)),
            pl.BlockSpec((1, D), lambda i: (0, 0)),
            pl.BlockSpec((D, D3), lambda i: (0, 0)),
            pl.BlockSpec((1, D3), lambda i: (0, 0)),
        ],
        out_specs=pl.BlockSpec((TR, D3), lambda i: (i, 0)),
        out_shape=jax.ShapeDtypeStruct((R, D3), jnp.bfloat16),
        compiler_params=_dense_params(),
    )(x2d, gamma.reshape(1, D), beta.reshape(1, D), w_qkv_t, b_qkv.reshape(1, D3))


# ------------ q-tiled multi-head attention + fused Wo + residual add -------------

def _attn_kernel(qkv_ref, bias_ref, wo_ref, bo_ref, res_ref, o_ref, mrg_ref,
                 *, h, d, tq):
    # qkv_ref: (S, 3D) bf16 (resident across q-tiles); bias_ref: (1, S) f32.
    dk = d // h
    q0 = pl.multiple_of(pl.program_id(1) * tq, tq)
    qrows = qkv_ref[pl.ds(q0, tq), :]                         # (TQ, 3D) bf16
    bias = bias_ref[...]                                      # additive mask bias
    for j in range(h):                                        # static unroll over heads
        lo = j * dk
        hi = lo + dk
        qj = qrows[:, lo:hi]                                  # scale folded into Wq
        kj = qkv_ref[:, d + lo:d + hi]                        # (S, dk) bf16
        vj = qkv_ref[:, 2 * d + lo:2 * d + hi]                # (S, dk) bf16
        s = lax.dot_general(qj, kj, (((1,), (1,)), ((), ())),
                            preferred_element_type=jnp.float32)     # (TQ, S) f32
        s = s + bias                                          # masked_fill -> +(-1e9)
        m = jnp.max(s, axis=-1, keepdims=True)
        e = jnp.exp(s - m)
        l = jnp.sum(e, axis=-1, keepdims=True)
        pv = jnp.dot(e.astype(jnp.bfloat16), vj,
                     preferred_element_type=jnp.float32)      # (TQ, dk)
        # normalize AFTER the PV matmul ((TQ,dk) multiply instead of (TQ,S)) and
        # write straight into the merge scratch -> per-head buffers die here.
        mrg_ref[:, lo:hi] = pv * pl.reciprocal(l, approx=True)
    # fused output projection + residual epilogue
    out = jnp.dot(mrg_ref[...].astype(jnp.bfloat16), wo_ref[...],
                  preferred_element_type=jnp.float32)
    o_ref[...] = out + bo_ref[...] + res_ref[...]             # residual stays f32


def attention_out(qkv3, mask_bias, res2d, wo_t, bo, h):
    """qkv3: (B, S, 3D) bf16; mask_bias: (B, 1, S) f32; res2d: (B*S, D) f32."""
    B, S, D3 = qkv3.shape
    D = D3 // 3
    TQ = _q_tile(S)
    nq = S // TQ
    R = B * S
    return pl.pallas_call(
        functools.partial(_attn_kernel, h=h, d=D, tq=TQ),
        grid=(B, nq),
        in_specs=[
            pl.BlockSpec((None, S, D3), lambda b, qi: (b, 0, 0)),   # contiguous QKV
            pl.BlockSpec((None, 1, S), lambda b, qi: (b, 0, 0)),    # per-batch mask
            pl.BlockSpec((D, D), lambda b, qi: (0, 0)),             # Wo (resident)
            pl.BlockSpec((1, D), lambda b, qi: (0, 0)),             # bo
            pl.BlockSpec((TQ, D), lambda b, qi: (b * nq + qi, 0)),  # residual rows
        ],
        out_specs=pl.BlockSpec((TQ, D), lambda b, qi: (b * nq + qi, 0)),
        out_shape=jax.ShapeDtypeStruct((R, D), jnp.float32),
        scratch_shapes=[pltpu.VMEM((TQ, D), jnp.float32)],          # head-merge buffer
        compiler_params=pltpu.CompilerParams(
            dimension_semantics=("parallel", "parallel"),
            vmem_limit_bytes=_VMEM_LIMIT),
    )(qkv3, mask_bias, wo_t, bo.reshape(1, D), res2d)


# --------------- fused LN2 + FFN + residual (+ optional final LN) ----------------

def _ln_ffn_res_kernel(x_ref, g_ref, b_ref, w1_ref, b1_ref, w2_ref, b2_ref, *rest,
                       eps, final_ln):
    if final_ln:
        fg_ref, fb_ref, o_ref = rest
    else:
        (o_ref,) = rest
    x = x_ref[...]                                            # (TR, D) f32
    diff, inv = _ln_stats(x, eps)
    xn = g_ref[...] * diff * inv + b_ref[...]
    hdn = jnp.dot(xn.astype(jnp.bfloat16), w1_ref[...],
                  preferred_element_type=jnp.float32) + b1_ref[...]
    hdn = jnp.maximum(hdn, 0.0)
    acc = jnp.dot(hdn.astype(jnp.bfloat16), w2_ref[...],
                  preferred_element_type=jnp.float32)
    y = acc + b2_ref[...] + x                                 # + residual (f32)
    if final_ln:                                              # fused encoder-final LN
        d2, i2 = _ln_stats(y, eps)
        y = fg_ref[...] * d2 * i2 + fb_ref[...]
    o_ref[...] = y


def ln_ffn_residual(x2d, gamma, beta, w1_t, b1, w2_t, b2,
                    final_g=None, final_b=None, eps=1e-6):
    R, D = x2d.shape
    Dff = w1_t.shape[1]
    resident = 8 * D * Dff                     # double-buffered bf16 W1 + W2
    per_row = 24 * D + 8 * Dff                 # x/out f32 2-buf + f32 hidden + temps
    TR = _row_tile(R, per_row, resident)
    final_ln = final_g is not None
    inputs = [x2d, gamma.reshape(1, D), beta.reshape(1, D),
              w1_t, b1.reshape(1, Dff), w2_t, b2.reshape(1, D)]
    in_specs = [
        pl.BlockSpec((TR, D), lambda i: (i, 0)),
        pl.BlockSpec((1, D), lambda i: (0, 0)),
        pl.BlockSpec((1, D), lambda i: (0, 0)),
        pl.BlockSpec((D, Dff), lambda i: (0, 0)),
        pl.BlockSpec((1, Dff), lambda i: (0, 0)),
        pl.BlockSpec((Dff, D), lambda i: (0, 0)),
        pl.BlockSpec((1, D), lambda i: (0, 0)),
    ]
    if final_ln:
        inputs += [final_g.reshape(1, D), final_b.reshape(1, D)]
        in_specs += [pl.BlockSpec((1, D), lambda i: (0, 0)),
                     pl.BlockSpec((1, D), lambda i: (0, 0))]
    return pl.pallas_call(
        functools.partial(_ln_ffn_res_kernel, eps=eps, final_ln=final_ln),
        grid=(R // TR,),
        in_specs=in_specs,
        out_specs=pl.BlockSpec((TR, D), lambda i: (i, 0)),
        out_shape=jax.ShapeDtypeStruct((R, D), jnp.float32),
        compiler_params=_dense_params(),
    )(*inputs)


# ---------------------------------- orchestration --------------------------------

def encoder_forward(params, x, mask):
    """x: (B, S, D) float32; mask: (B, 1, S) float32 (1 = keep, 0 = pad)."""
    B, S, D = x.shape
    h = params["h"]
    layers = params["layers"]
    assert layers, "final LayerNorm is fused into the last layer's FFN kernel"
    R = B * S
    x2 = x.reshape(R, D)
    # additive attention-mask bias: 0 where kept, -1e9 where masked
    mask_bias = (mask.astype(jnp.float32) - 1.0) * 1e9        # (B, 1, S)

    n_layers = len(layers)
    for li, lp in enumerate(layers):
        # --- SublayerConnection #0: x + self_attn(norm1(x), mask) ---
        qkv = ln_qkv(x2, lp["ln1_g"], lp["ln1_b"], lp["wqkv_t"], lp["bqkv"])
        x2 = attention_out(qkv.reshape(B, S, 3 * D), mask_bias, x2,
                           lp["wo_t"], lp["bo"], h)                       # (R, D) f32
        # --- SublayerConnection #1: x + feed_forward(norm2(x)) [+ final LN] ---
        last = li == n_layers - 1
        x2 = ln_ffn_residual(x2, lp["ln2_g"], lp["ln2_b"],
                             lp["w1_t"], lp["b1"], lp["w2_t"], lp["b2"],
                             final_g=params["norm_g"] if last else None,
                             final_b=params["norm_b"] if last else None)
    return x2.reshape(B, S, D)


def init_params(key, D, h, d_ff, N):
    def dense(k, din, dout):
        # torch nn.Linear weight layout is (out, in); we store W^T for x @ W^T.
        w = jax.random.normal(k, (dout, din), jnp.float32) * 0.02
        return w.T, jnp.zeros((dout,), jnp.float32)

    ks = jax.random.split(key, 6)
    wq_t, bq = dense(ks[0], D, D)
    wk_t, bk = dense(ks[1], D, D)
    wv_t, bv = dense(ks[2], D, D)
    wo_t, bo = dense(ks[3], D, D)
    w1_t, b1 = dense(ks[4], D, d_ff)
    w2_t, b2 = dense(ks[5], d_ff, D)
    # fold the 1/sqrt(dk) attention scale into the Q projection (identical math,
    # removes the per-head in-kernel multiply).
    scale = 1.0 / math.sqrt(D // h)
    wq_t = wq_t * scale
    bq = bq * scale
    layer = dict(
        ln1_g=jnp.ones((D,), jnp.float32), ln1_b=jnp.zeros((D,), jnp.float32),
        ln2_g=jnp.ones((D,), jnp.float32), ln2_b=jnp.zeros((D,), jnp.float32),
        # fused QKV projection: one (D, 3D) bf16 weight, (3D,) f32 bias
        wqkv_t=jnp.concatenate([wq_t, wk_t, wv_t], axis=1).astype(jnp.bfloat16),
        bqkv=jnp.concatenate([bq, bk, bv], axis=0),
        wo_t=wo_t.astype(jnp.bfloat16), bo=bo,
        w1_t=w1_t.astype(jnp.bfloat16), b1=b1,
        w2_t=w2_t.astype(jnp.bfloat16), b2=b2,
    )
    # clones() deep-copies one layer N times -> identical initial params per layer.
    layers = [dict(layer) for _ in range(N)]
    return dict(h=h, layers=layers,
                norm_g=jnp.ones((D,), jnp.float32),
                norm_b=jnp.zeros((D,), jnp.float32))


if __name__ == "__main__":
    B, S, D, H, DFF, N = 2, 8, 32, 4, 64, 2
    key = jax.random.PRNGKey(0)
    kx, kp = jax.random.split(key)
    x = jax.random.normal(kx, (B, S, D), jnp.float32)
    lengths = jnp.array([S, 5])
    mask = (jnp.arange(S)[None, None, :] < lengths[:, None, None]).astype(jnp.float32)  # (B,1,S)

    params = init_params(kp, D, H, DFF, N)
    out = jax.block_until_ready(encoder_forward(params, x, mask))
    assert out.shape == (B, S, D)
    assert bool(jnp.all(jnp.isfinite(out)))
    print("KERNEL_OK")
</pallas_src>

<mosaic_0001>
module attributes {stable_mosaic.version = 11 : i64} {
  func.func @_ln_qkv_kernel(%arg0: i32, %arg1: memref<8x32xf32, #tpu.memory_space<vmem>>, %arg2: memref<1x32xf32, #tpu.memory_space<vmem>>, %arg3: memref<1x32xf32, #tpu.memory_space<vmem>>, %arg4: memref<32x96xbf16, #tpu.memory_space<vmem>>, %arg5: memref<1x96xf32, #tpu.memory_space<vmem>>, %arg6: memref<8x96xbf16, #tpu.memory_space<vmem>>) attributes {dimension_semantics = [#tpu.dimension_semantics<parallel>], iteration_bounds = array<i64: 2>, scalar_prefetch = 0 : i64, scratch_operands = 0 : i64, tpu.core_type = #tpu.core_type<tc>, window_params = [{transform_indices = @transform_0, window_bounds = array<i64: 8, 32>}, {pipeline_mode = #tpu.pipeline_mode<synchronous>, transform_indices = @transform_1, window_bounds = array<i64: 1, 32>}, {pipeline_mode = #tpu.pipeline_mode<synchronous>, transform_indices = @transform_2, window_bounds = array<i64: 1, 32>}, {pipeline_mode = #tpu.pipeline_mode<synchronous>, transform_indices = @transform_3, window_bounds = array<i64: 32, 96>}, {pipeline_mode = #tpu.pipeline_mode<synchronous>, transform_indices = @transform_4, window_bounds = array<i64: 1, 96>}, {transform_indices = @transform_5, window_bounds = array<i64: 8, 96>}]} {
    %c0 = arith.constant 0 : index
    %c0_0 = arith.constant 0 : index
    %0 = vector.load %arg1[%c0, %c0_0] : memref<8x32xf32, #tpu.memory_space<vmem>>, vector<8x32xf32>
    %cst = arith.constant dense<0.000000e+00> : vector<8xf32>
    %1 = vector.multi_reduction <add>, %0, %cst [1] : vector<8x32xf32> to vector<8xf32>
    %2 = vector.shape_cast %1 : vector<8xf32> to vector<8x1xf32>
    %cst_1 = arith.constant 3.200000e+01 : f32
    %3 = vector.broadcast %cst_1 : f32 to vector<8x1xf32>
    %4 = arith.divf %2, %3 : vector<8x1xf32>
    %5 = vector.broadcast %4 : vector<8x1xf32> to vector<8x32xf32>
    %6 = arith.subf %0, %5 : vector<8x32xf32>
    %7 = arith.mulf %6, %6 : vector<8x32xf32>
    %cst_2 = arith.constant dense<0.000000e+00> : vector<8xf32>
    %8 = vector.multi_reduction <add>, %7, %cst_2 [1] : vector<8x32xf32> to vector<8xf32>
    %9 = vector.shape_cast %8 : vector<8xf32> to vector<8x1xf32>
    %cst_3 = arith.constant 0.0322580636 : f32
    %10 = vector.broadcast %cst_3 : f32 to vector<8x1xf32>
    %11 = arith.mulf %9, %10 : vector<8x1xf32>
    %12 = math.sqrt %11 : vector<8x1xf32>
    %cst_4 = arith.constant 9.99999997E-7 : f32
    %13 = vector.broadcast %cst_4 : f32 to vector<8x1xf32>
    %14 = arith.addf %12, %13 : vector<8x1xf32>
    %15 = tpu.reciprocal %14 : vector<8x1xf32> -> vector<8x1xf32>
    %c0_5 = arith.constant 0 : index
    %c0_6 = arith.constant 0 : index
    %16 = vector.load %arg2[%c0_5, %c0_6] : memref<1x32xf32, #tpu.memory_space<vmem>>, vector<1x32xf32>
    %17 = vector.broadcast %16 : vector<1x32xf32> to vector<8x32xf32>
    %18 = arith.mulf %17, %6 : vector<8x32xf32>
    %19 = vector.broadcast %15 : vector<8x1xf32> to vector<8x32xf32>
    %20 = arith.mulf %18, %19 : vector<8x32xf32>
    %c0_7 = arith.constant 0 : index
    %c0_8 = arith.constant 0 : index
    %21 = vector.load %arg3[%c0_7, %c0_8] : memref<1x32xf32, #tpu.memory_space<vmem>>, vector<1x32xf32>
    %22 = vector.broadcast %21 : vector<1x32xf32> to vector<8x32xf32>
    %23 = arith.addf %20, %22 : vector<8x32xf32>
    %24 = arith.truncf %23 : vector<8x32xf32> to vector<8x32xbf16>
    %c0_9 = arith.constant 0 : index
    %c0_10 = arith.constant 0 : index
    %25 = vector.load %arg4[%c0_9, %c0_10] : memref<32x96xbf16, #tpu.memory_space<vmem>>, vector<32x96xbf16>
    %cst_11 = arith.constant dense<0.000000e+00> : vector<8x96xf32>
    %26 = tpu.matmul %24, %25, %cst_11 {dimension_numbers = #tpu.dot_dimension_numbers<[1], [0], [0], [1], [0, 0, 1, 1], [], []>} : vector<8x32xbf16>, vector<32x96xbf16>, vector<8x96xf32> -> vector<8x96xf32>
    %c0_12 = arith.constant 0 : index
    %c0_13 = arith.constant 0 : index
    %27 = vector.load %arg5[%c0_12, %c0_13] : memref<1x96xf32, #tpu.memory_space<vmem>>, vector<1x96xf32>
    %28 = vector.broadcast %27 : vector<1x96xf32> to vector<8x96xf32>
    %29 = arith.addf %26, %28 : vector<8x96xf32>
    %30 = arith.truncf %29 : vector<8x96xf32> to vector<8x96xbf16>
    %c0_14 = arith.constant 0 : index
    %c0_15 = arith.constant 0 : index
    %31 = vector.load %arg6[%c0_14, %c0_15] : memref<8x96xbf16, #tpu.memory_space<vmem>>, vector<8x96xbf16>
    tpu.vector_store %arg6[%c0_14, %c0_15], %30 {strides = array<i32>} : memref<8x96xbf16, #tpu.memory_space<vmem>>, vector<8x96xbf16>,
    return
  }
  func.func @transform_0(%arg0: i32) -> (i32, i32) {
    %c0_i32 = arith.constant 0 : i32
    %c0_i32_0 = arith.constant 0 : i32
    return %arg0, %c0_i32 : i32, i32
  }
  func.func @transform_1(%arg0: i32) -> (i32, i32) {
    %c0_i32 = arith.constant 0 : i32
    %c0_i32_0 = arith.constant 0 : i32
    %c0_i32_1 = arith.constant 0 : i32
    return %c0_i32, %c0_i32_0 : i32, i32
  }
  func.func @transform_2(%arg0: i32) -> (i32, i32) {
    %c0_i32 = arith.constant 0 : i32
    %c0_i32_0 = arith.constant 0 : i32
    %c0_i32_1 = arith.constant 0 : i32
    return %c0_i32, %c0_i32_0 : i32, i32
  }
  func.func @transform_3(%arg0: i32) -> (i32, i32) {
    %c0_i32 = arith.constant 0 : i32
    %c0_i32_0 = arith.constant 0 : i32
    %c0_i32_1 = arith.constant 0 : i32
    return %c0_i32, %c0_i32_0 : i32, i32
  }
  func.func @transform_4(%arg0: i32) -> (i32, i32) {
    %c0_i32 = arith.constant 0 : i32
    %c0_i32_0 = arith.constant 0 : i32
    %c0_i32_1 = arith.constant 0 : i32
    return %c0_i32, %c0_i32_0 : i32, i32
  }
  func.func @transform_5(%arg0: i32) -> (i32, i32) {
    %c0_i32 = arith.constant 0 : i32
    %c0_i32_0 = arith.constant 0 : i32
    return %arg0, %c0_i32 : i32, i32
  }
}

</mosaic_0001>

<llo_original>
// kernel: tpu_custom_call.1
$region0: #{tpu_custom_call.1}
  #allocation0 [shape = 'u32[]', space=smem, size = 0x4, offset = 0x4, fixed_abs, tag = 'smem constant byte address 0x4 - core index']
  #allocation1 [shape = 'u32[144,128]{1,0:T(1,128)}', space=vmem, size = 0x12000, scoped, tag = 'internal scratch']
  %s0 = inlined_call_operand.hbm [shape: f32[16,32], index: 0, kind: input, shape index: {}]
  %s1 = inlined_call_operand.vmem [shape: f32[1,32], index: 1, kind: input, shape index: {}]
  %s2 = inlined_call_operand.vmem [shape: f32[1,32], index: 2, kind: input, shape index: {}]
  %s3 = inlined_call_operand.hbm [shape: bf16[32,96], index: 3, kind: input, shape index: {}]
  %s4 = inlined_call_operand.vmem [shape: f32[1,96], index: 4, kind: input, shape index: {}]
  %s5 = inlined_call_operand.hbm [shape: bf16[16,96], index: 5, kind: output, shape index: {}]
  %s6 = sld [smem:[#allocation0]]
  $region61: #{tpu_custom_call.1} parent=0
    _
  %s8 = ssub.s32 1, %s6
  %s9 = scalar_select 0, %s8, %s6
  $region1: #{tpu_custom_call.1} parent=0
    #allocation2 [shape = 'u8[8192]{0}', space=vmem, size = 0x2000, scoped, tag = 'input window, operand 0']
    #allocation3 [shape = 's32[2]{0}', space=sflag, size = 0x8, scoped, tag = 'scoped memory for tpu_custom_call.1']
    #allocation4 [shape = 's32[2]{0}', space=sflag, size = 0x8, scoped, tag = 'scoped memory for tpu_custom_call.1']
    #allocation5 [shape = 'u8[8192]{0}', space=vmem, size = 0x2000, scoped, tag = 'input window, operand 3, single buffered']
    #allocation6 [shape = 's32[1]{0}', space=sflag, size = 0x4, scoped, tag = 'scoped memory for tpu_custom_call.1']
    #allocation7 [shape = 'u8[4096]{0}', space=vmem, size = 0x1000, scoped, tag = 'output window, operand 0']
    %10 = vsyncpa [#allocation3], 0
    %s11 = scalar_lea.sflag [#allocation3], 1
    %12 = vsyncpa %s11, 0
    %13 = vsyncpa [#allocation6], 0
    %14 = vsyncpa [#allocation4], 0
    %s15 = scalar_lea.sflag [#allocation4], 1
    %16 = vsyncpa %s15, 0
    loop: start=0, step=1, limit=4
    $region2: #{tpu_custom_call.1} parent=1 // loop_pre_header
      _
    $region3: #{tpu_custom_call.1} parent=1 // loop_header
      %s18 = sphi 0, %s22
      %p19 = scmp.ge.s32.totalorder %s18, 4
      %s28 = sphi 0, %s30
      %s31 = sphi 0, %s28
      %s32 = sphi 0, %s31
      %s48 = sphi 0, %s32
      %s52 = sphi 0, %s52
      %s54 = sphi 0, %s52
      %s55 = sphi 0, %s54
      %s69 = sphi 0, %s55
      %s73 = sphi 0, %s73
      %s75 = sphi 0, %s73
      %s76 = sphi 0, %s75
      %s90 = sphi 0, %s76
      %s94 = sphi 0, %s94
      %s96 = sphi 0, %s94
      %s97 = sphi 0, %s96
      %s111 = sphi 0, %s97
      %s115 = sphi 0, %s115
      %s117 = sphi 0, %s115
      %s118 = sphi 0, %s117
      %s132 = sphi 0, %s118
      %s138 = sphi 0, %s140
      %s141 = sphi 0, %s138
      %s142 = sphi 0, %s141
      %s158 = sphi 0, %s142
    $region4: #{tpu_custom_call.1} parent=1 // loop_header_branch
      %21 = sbr.rel (%p19) target = $region8
    $region5: #{tpu_custom_call.1} parent=1 // loop_body
      %s23 = ssub.s32 %s18, 1
      %s24 = ssub.s32 %s18, 2
      %s25 = sadd.s32 %s18, 1
      %s26 = ssub.s32 %s18, %s25
      %p27 = scmp.eq.s32.totalorder %s26, 0
      %s29 = sadd.s32 %s28, 1
      %s30 = scalar_select %p27, %s28, %s29
      %p33 = pneg %p27
      %p34 = scmp.eq.s32.totalorder %s18, 1
      %p35 = por %p33, %p34
      %p36 = scmp.ne.s32.totalorder %s28, %s31
      %p37 = scmp.eq.s32.totalorder %s18, 0
      %p38 = por %p36, %p37
      %p39 = scmp.ne.s32.totalorder %s28, %s31
      %p40 = scmp.eq.s32.totalorder %s23, 1
      %p41 = por %p39, %p40
      %p42 = scmp.ne.s32.totalorder %s31, %s32
      %p43 = scmp.eq.s32.totalorder %s23, 0
      %p44 = por %p42, %p43
      %p45 = scmp.ne.s32.totalorder %s31, %s32
      %p46 = scmp.eq.s32.totalorder %s24, 1
      %p47 = por %p45, %p46
      %p49 = scmp.ne.s32.totalorder %s32, %s48
      %p50 = scmp.eq.s32.totalorder %s24, 0
      %p51 = por %p49, %p50
      %s53 = sadd.s32 %s52, 1
      %p56 = scmp.eq.s32.totalorder %s18, 1
      %p57 = scmp.ne.s32.totalorder %s52, %s54
      %p58 = scmp.eq.s32.totalorder %s18, 0
      %p59 = por %p57, %p58
      %p60 = scmp.ne.s32.totalorder %s52, %s54
      %p61 = scmp.eq.s32.totalorder %s23, 1
      %p62 = por %p60, %p61
      %p63 = scmp.ne.s32.totalorder %s54, %s55
      %p64 = scmp.eq.s32.totalorder %s23, 0
      %p65 = por %p63, %p64
      %p66 = scmp.ne.s32.totalorder %s54, %s55
      %p67 = scmp.eq.s32.totalorder %s24, 1
      %p68 = por %p66, %p67
      %p70 = scmp.ne.s32.totalorder %s55, %s69
      %p71 = scmp.eq.s32.totalorder %s24, 0
      %p72 = por %p70, %p71
      %s74 = sadd.s32 %s73, 1
      %p77 = scmp.eq.s32.totalorder %s18, 1
      %p78 = scmp.ne.s32.totalorder %s73, %s75
      %p79 = scmp.eq.s32.totalorder %s18, 0
      %p80 = por %p78, %p79
      %p81 = scmp.ne.s32.totalorder %s73, %s75
      %p82 = scmp.eq.s32.totalorder %s23, 1
      %p83 = por %p81, %p82
      %p84 = scmp.ne.s32.totalorder %s75, %s76
      %p85 = scmp.eq.s32.totalorder %s23, 0
      %p86 = por %p84, %p85
      %p87 = scmp.ne.s32.totalorder %s75, %s76
      %p88 = scmp.eq.s32.totalorder %s24, 1
      %p89 = por %p87, %p88
      %p91 = scmp.ne.s32.totalorder %s76, %s90
      %p92 = scmp.eq.s32.totalorder %s24, 0
      %p93 = por %p91, %p92
      %s95 = sadd.s32 %s94, 1
      %p98 = scmp.eq.s32.totalorder %s18, 1
      %p99 = scmp.ne.s32.totalorder %s94, %s96
      %p100 = scmp.eq.s32.totalorder %s18, 0
      %p101 = por %p99, %p100
      %p102 = scmp.ne.s32.totalorder %s94, %s96
      %p103 = scmp.eq.s32.totalorder %s23, 1
      %p104 = por %p102, %p103
      %p105 = scmp.ne.s32.totalorder %s96, %s97
      %p106 = scmp.eq.s32.totalorder %s23, 0
      %p107 = por %p105, %p106
      %p108 = scmp.ne.s32.totalorder %s96, %s97
      %p109 = scmp.eq.s32.totalorder %s24, 1
      %p110 = por %p108, %p109
      %p112 = scmp.ne.s32.totalorder %s97, %s111
      %p113 = scmp.eq.s32.totalorder %s24, 0
      %p114 = por %p112, %p113
      %s116 = sadd.s32 %s115, 1
      %p119 = scmp.eq.s32.totalorder %s18, 1
      %p120 = scmp.ne.s32.totalorder %s115, %s117
      %p121 = scmp.eq.s32.totalorder %s18, 0
      %p122 = por %p120, %p121
      %p123 = scmp.ne.s32.totalorder %s115, %s117
      %p124 = scmp.eq.s32.totalorder %s23, 1
      %p125 = por %p123, %p124
      %p126 = scmp.ne.s32.totalorder %s117, %s118
      %p127 = scmp.eq.s32.totalorder %s23, 0
      %p128 = por %p126, %p127
      %p129 = scmp.ne.s32.totalorder %s117, %s118
      %p130 = scmp.eq.s32.totalorder %s24, 1
      %p131 = por %p129, %p130
      %p133 = scmp.ne.s32.totalorder %s118, %s132
      %p134 = scmp.eq.s32.totalorder %s24, 0
      %p135 = por %p133, %p134
      %s136 = ssub.s32 %s18, %s25
      %p137 = scmp.eq.s32.totalorder %s136, 0
      %s139 = sadd.s32 %s138, 1
      %s140 = scalar_select %p137, %s138, %s139
      %p143 = pneg %p137
      %p144 = scmp.eq.s32.totalorder %s18, 1
      %p145 = por %p143, %p144
      %p146 = scmp.ne.s32.totalorder %s138, %s141
      %p147 = scmp.eq.s32.totalorder %s18, 0
      %p148 = por %p146, %p147
      %p149 = scmp.ne.s32.totalorder %s138, %s141
      %p150 = scmp.eq.s32.totalorder %s23, 1
      %p151 = por %p149, %p150
      %p152 = scmp.ne.s32.totalorder %s141, %s142
      %p153 = scmp.eq.s32.totalorder %s23, 0
      %p154 = por %p152, %p153
      %p155 = scmp.ne.s32.totalorder %s141, %s142
      %p156 = scmp.eq.s32.totalorder %s24, 1
      %p157 = por %p155, %p156
      %p159 = scmp.ne.s32.totalorder %s142, %s158
      %p160 = scmp.eq.s32.totalorder %s24, 0
      %p161 = por %p159, %p160
      %p162 = scmp.le.s32.totalorder 1, %s18
      %p163 = scmp.lt.s32.totalorder %s18, 3
      %p164 = pnand %p162, %p163
      %p165 = pneg %p164
      // Predicated region
      $region9: #{tpu_custom_call.1} parent=5 // pred_check
        _
      $region10: #{tpu_custom_call.1} parent=5 // pred_check_branch
        %167 = sbr.rel (%p164) target = $region12
      $region11: #{tpu_custom_call.1} parent=5 // pred_region
        %s168 = ssub.s32 %s18, 1
        // Predicated region
        $region13: #{tpu_custom_call.1} parent=11 // pred_check
          %p169 = pneg %p65
        $region14: #{tpu_custom_call.1} parent=11 // pred_check_branch
          %171 = sbr.rel (%p169) target = $region16
        $region15: #{tpu_custom_call.1} parent=11 // pred_region
          _
        $region16: #{tpu_custom_call.1} parent=11 // pred_fallthru
          _
        // Predicated region
        $region17: #{tpu_custom_call.1} parent=11 // pred_check
          %p172 = pneg %p86
        $region18: #{tpu_custom_call.1} parent=11 // pred_check_branch
          %174 = sbr.rel (%p172) target = $region20
        $region19: #{tpu_custom_call.1} parent=11 // pred_region
          _
        $region20: #{tpu_custom_call.1} parent=11 // pred_fallthru
          _
        // Predicated region
        $region21: #{tpu_custom_call.1} parent=11 // pred_check
          %p175 = pneg %p107
        $region22: #{tpu_custom_call.1} parent=11 // pred_check_branch
          %177 = sbr.rel (%p175) target = $region24
        $region23: #{tpu_custom_call.1} parent=11 // pred_region
          %s179 = ssub.s32 256, 256
          %180 = vsyncadd [#allocation6], %s179
          %s181 = sshll.u32 [#allocation5], 4
          %s182 = int_to_ptr.vmem [resolvable:$true] %s181
          %187 = dma.hbm_to_vmem [thread:$0]  %s3, 256, %s182, [#allocation6], 64, 64, 4
        $region24: #{tpu_custom_call.1} parent=11 // pred_fallthru
          _
        // Predicated region
        $region25: #{tpu_custom_call.1} parent=11 // pred_check
          %p188 = pneg %p128
        $region26: #{tpu_custom_call.1} parent=11 // pred_check_branch
          %190 = sbr.rel (%p188) target = $region28
        $region27: #{tpu_custom_call.1} parent=11 // pred_region
          _
        $region28: #{tpu_custom_call.1} parent=11 // pred_fallthru
          _
      $region12: #{tpu_custom_call.1} parent=5 // pred_fallthru
        _
      %p191 = scmp.lt.s32.totalorder %s18, 2
      // Predicated region
      $region29: #{tpu_custom_call.1} parent=5 // pred_check
        %p192 = pneg %p191
      $region30: #{tpu_custom_call.1} parent=5 // pred_check_branch
        %194 = sbr.rel (%p192) target = $region32
      $region31: #{tpu_custom_call.1} parent=5 // pred_region
        // Predicated region
        $region33: #{tpu_custom_call.1} parent=31 // pred_check
          %p195 = pneg %p38
        $region34: #{tpu_custom_call.1} parent=31 // pred_check_branch
          %197 = sbr.rel (%p195) target = $region36
        $region35: #{tpu_custom_call.1} parent=31 // pred_region
          %s198 = sand.u32 %s28, 1
          %s199 = scalar_lea.sflag [#allocation3], %s198
          %s200 = sand.u32 %s28, 1
          %s201 = smul.addr %s200, 8
          %s202 = scalar_lea.vmem [#allocation2], %s201
          %s204 = ssub.s32 128, 128
          %205 = vsyncadd %s199, %s204
          %s206 = smul.addr %s18, 128
          %s207 = scalar_lea.hbm %s0, %s206
          %s209 = sshll.u32 %s202, 4
          %s210 = int_to_ptr.vmem [resolvable:$true] %s209
          %212 = dma.hbm_to_vmem [thread:$0]  %s207, 128, %s210, %s199
        $region36: #{tpu_custom_call.1} parent=31 // pred_fallthru
          _
      $region32: #{tpu_custom_call.1} parent=5 // pred_fallthru
        _
      %p213 = scmp.le.s32.totalorder 1, %s18
      %p214 = scmp.lt.s32.totalorder %s18, 3
      %p215 = pnand %p213, %p214
      %p216 = pneg %p215
      // Predicated region
      $region37: #{tpu_custom_call.1} parent=5 // pred_check
        _
      $region38: #{tpu_custom_call.1} parent=5 // pred_check_branch
        %218 = sbr.rel (%p215) target = $region40
      $region39: #{tpu_custom_call.1} parent=5 // pred_region
        %s219 = ssub.s32 %s18, 1
        %s220 = sand.u32 %s31, 1
        %s221 = scalar_lea.sflag [#allocation3], %s220
        %s222 = sand.u32 %s31, 1
        %s223 = smul.addr %s222, 8
        %s224 = scalar_lea.vmem [#allocation2], %s223
        // Predicated region
        $region41: #{tpu_custom_call.1} parent=39 // pred_check
          %p225 = pneg %p44
        $region42: #{tpu_custom_call.1} parent=39 // pred_check_branch
          %227 = sbr.rel (%p225) target = $region44
        $region43: #{tpu_custom_call.1} parent=39 // pred_region
          %228 = dma.done %s221, 128
        $region44: #{tpu_custom_call.1} parent=39 // pred_fallthru
          _
        // Predicated region
        $region45: #{tpu_custom_call.1} parent=39 // pred_check
          %p229 = pneg %p107
        $region46: #{tpu_custom_call.1} parent=39 // pred_check_branch
          %231 = sbr.rel (%p229) target = $region48
        $region47: #{tpu_custom_call.1} parent=39 // pred_region
          %232 = dma.done [#allocation6], 256
        $region48: #{tpu_custom_call.1} parent=39 // pred_fallthru
          _
        %s233 = sand.u32 %s31, 1
        %s234 = scalar_lea.sflag [#allocation3], %s233
        %s235 = sand.u32 %s31, 1
        %s236 = smul.addr %s235, 8
        %s237 = scalar_lea.vmem [#allocation2], %s236
        %p238 = pneg %p44
        %p239 = pneg %p41
        %p240 = pneg %p65
        %p241 = pneg %p62
        %p242 = pneg %p86
        %p243 = pneg %p83
        %p244 = pneg %p107
        %p245 = pneg %p104
        %p246 = pneg %p128
        %p247 = pneg %p125
        %p248 = pneg %p154
        %p249 = pneg %p151
        %s250 = sand.u32 %s141, 1
        %s251 = scalar_lea.sflag [#allocation4], %s250
        %s252 = sand.u32 %s141, 1
        %s253 = smul.addr %s252, 4
        %s254 = scalar_lea.vmem [#allocation7], %s253
        %v256 = vld [vmem:[%s224] sm:$0xff]
        %vm257 = vcmask 261120
        %v258 = vsel %vm257, %v256, 0.0
        %259 = vadd.xlane.f32.xlu0 %v258
        %v260 = vpop.xlane.xlu0 %259
        %v261 = vrcp.pop 32.0
        %v262 = vmul.f32 %v260, %v261
        %v263 = vsub.f32 %v256, %v262
        %v264 = vmul.f32 %v263, %v263
        %v265 = vsel %vm257, %v264, 0.0
        %266 = vadd.xlane.f32.xlu0 %v265
        %v267 = vpop.xlane.xlu0 %266
        %v268 = vmul.f32 %v267, 0.032258064
        %v269 = vrsqrt.pop %v268
        %v270 = vmul.f32 %v268, %v269
        %vm271 = vcmp.eq.f32.partialorder %v268, inf
        %v272 = vsel %vm271, %v268, %v270
        %vm273 = vcmp.eq.f32.partialorder %v268, 0.0
        %v274 = vand.u32 %v268, 2147483648
        %v275 = vsel %vm273, %v274, %v272
        %v276 = vadd.f32 %v275, 1e-06
        %v277 = vrcp.pop %v276
        %v278 = vld [vmem:[%s1] sm:$0x1]
        %v280 = vlaneseq
        %v281 = vshrl.u32 %v280, 7
        %v282 = vsub.s32 0, %v281
        %v283 = vrot.slane %v278, %v282
        %v285 = vmul.f32 %v283, %v263
        %v286 = vmul.f32 %v285, %v277
        %v287 = vld [vmem:[%s2] sm:$0x1]
        %v289 = vlaneseq
        %v290 = vshrl.u32 %v289, 7
        %v291 = vsub.s32 0, %v290
        %v292 = vrot.slane %v287, %v291
        %v294 = vadd.f32 %v286, %v292
        %v295 = vpack.c.bf16 %v294, %v294
        %v296 = vld [vmem:[#allocation5] sm:$0xf]
        %v297 = vld [vmem:[#allocation5 + $0x4] sm:$0xf]
        %v298 = vld [vmem:[#allocation5 + $0x8] sm:$0xf]
        %v299 = vld [vmem:[#allocation5 + $0xc] sm:$0xf]
        %v300 = vld [vmem:[%s4] sm:$0x1]
        %v302 = vlaneseq
        %v303 = vshrl.u32 %v302, 7
        %v304 = vsub.s32 0, %v303
        %v305 = vrot.slane %v300, %v304
        %v311 = vunpack.c.l.b16 %v296
        %v312 = vunpack.c.l.b16 %v297
        %v313 = vunpack.c.l.b16 %v298
        %v314 = vunpack.c.l.b16 %v299
        %v315 = vpack.c.b16 %v312, %v311
        %v316 = vpack.c.b16 %v314, %v313
        %v320 = vsel %vm257, %v295, 0
        %322 = vmatprep.subr.bf16.mxu0 0
        %323 = vmatpush1.bf16.msra.mxu0 %v315
        %324 = vmatprep.subr.bf16.mxu0 0
        %325 = vmatpush1.bf16.msra.mxu0 %v316
        %326 = vmatprep.subr.bf16.mxu0 0
        %327 = vmatpush1.bf16.msra.mxu0 0
        %328 = vmatprep.subr.bf16.mxu0 0
        %329 = vmatpush1.bf16.msra.mxu0 0
        %330 = vmatprep.subr.bf16.mxu0 0
        %331 = vmatpush1.bf16.msra.mxu0 0
        %332 = vmatprep.subr.bf16.mxu0 0
        %333 = vmatpush1.bf16.msra.mxu0 0
        %334 = vmatprep.subr.bf16.mxu0 0
        %335 = vmatpush1.bf16.msra.mxu0 0
        %336 = vmatprep.subr.bf16.mxu0 0
        %337 = vmatpush1.bf16.msra.mxu0 0
        %338 = vmatprep.subr.bf16.mxu0 0
        %339 = vmatpush1.bf16.msra.mxu0 0
        %340 = vmatprep.subr.bf16.mxu0 0
        %341 = vmatpush1.bf16.msra.mxu0 0
        %342 = vmatprep.subr.bf16.mxu0 0
        %343 = vmatpush1.bf16.msra.mxu0 0
        %344 = vmatprep.subr.bf16.mxu0 0
        %345 = vmatpush1.bf16.msra.mxu0 0
        %346 = vmatprep.subr.bf16.mxu0 0
        %347 = vmatpush1.bf16.msra.mxu0 0
        %348 = vmatprep.subr.bf16.mxu0 0
        %349 = vmatpush1.bf16.msra.mxu0 0
        %350 = vmatprep.subr.bf16.mxu0 0
        %351 = vmatpush1.bf16.msra.mxu0 0
        %352 = vmatprep.subr.bf16.mxu0 0
        %353 = vmatpush1.bf16.msra.mxu0 0
        %354 = vmatprep.mubr.bf16.mxu0 0
        %355 = vmatmul.mubr.bf16.gmra.mrb[0].mxu0 %v320
        %v356 = vpop.f32.mrb[0].mxu0
        %v357 = vadd.f32 %v305, %v356
        %v358 = vpop.f32.mrb[0].mxu0
        %v359 = vpop.f32.mrb[0].mxu0
        %v360 = vpop.f32.mrb[0].mxu0
        %361 = vdwg.mxu0
        %v362 = vpack.c.bf16 %v357, %v357
        %vm363 = vcmask 781312
        %364 = vst.msk [vmem:[%s254] sm:$0xf] %vm363, %v362
        %s365 = sand.u32 %s141, 1
        %s366 = scalar_lea.sflag [#allocation4], %s365
        %s367 = sand.u32 %s141, 1
        %s368 = smul.addr %s367, 4
        %s369 = scalar_lea.vmem [#allocation7], %s368
        // Predicated region
        $region49: #{tpu_custom_call.1} parent=39 // pred_check
          %p370 = pneg %p151
        $region50: #{tpu_custom_call.1} parent=39 // pred_check_branch
          %372 = sbr.rel (%p370) target = $region52
        $region51: #{tpu_custom_call.1} parent=39 // pred_region
          %s374 = ssub.s32 64, 64
          %375 = vsyncadd %s366, %s374
          %s376 = smul.addr %s23, 64
          %s377 = scalar_lea.hbm %s5, %s376
          %s379 = sshll.u32 %s369, 4
          %s380 = int_to_ptr.vmem [resolvable:$true] %s379
          %382 = dma.vmem_to_hbm [thread:$0]  %s380, 64, %s377, %s366
        $region52: #{tpu_custom_call.1} parent=39 // pred_fallthru
          _
      $region40: #{tpu_custom_call.1} parent=5 // pred_fallthru
        _
      %p383 = scmp.le.s32.totalorder 2, %s18
      // Predicated region
      $region53: #{tpu_custom_call.1} parent=5 // pred_check
        %p384 = pneg %p383
      $region54: #{tpu_custom_call.1} parent=5 // pred_check_branch
        %386 = sbr.rel (%p384) target = $region56
      $region55: #{tpu_custom_call.1} parent=5 // pred_region
        %s387 = ssub.s32 %s18, 2
        // Predicated region
        $region57: #{tpu_custom_call.1} parent=55 // pred_check
          %p388 = pneg %p157
        $region58: #{tpu_custom_call.1} parent=55 // pred_check_branch
          %390 = sbr.rel (%p388) target = $region60
        $region59: #{tpu_custom_call.1} parent=55 // pred_region
          %s391 = sand.u32 %s142, 1
          %s392 = scalar_lea.sflag [#allocation4], %s391
          %s393 = sand.u32 %s142, 1
          %s394 = smul.addr %s393, 4
          %s395 = scalar_lea.vmem [#allocation7], %s394
          %396 = dma.done %s392, 64
        $region60: #{tpu_custom_call.1} parent=55 // pred_fallthru
          _
      $region56: #{tpu_custom_call.1} parent=5 // pred_fallthru
        _
    $region6: #{tpu_custom_call.1} parent=1 // loop_footer
      %s22 = sadd.s32 1, %s18
    $region7: #{tpu_custom_call.1} parent=1 // loop_footer_branch
      %17 = sbr.rel target = $region3
    $region8: #{tpu_custom_call.1} parent=1 // loop_exit
      _
    %397 = vsyncpa [#allocation3], 1
    %s398 = scalar_lea.sflag [#allocation3], 1
    %399 = vsyncpa %s398, 1
    %400 = vsyncpa [#allocation6], 1
    %401 = vsyncpa [#allocation4], 1
    %s402 = scalar_lea.sflag [#allocation4], 1
    %403 = vsyncpa %s402, 1

</llo_original>
